<compile_context>
chip_gen: v5e
topology: v5e:2x2
jax: 0.10.0
libtpu: 0.0.40
codegen_flags: <defaults>
</compile_context>

<pallas_src>
import functools

import jax
import jax.numpy as jnp
from jax.experimental import pallas as pl
from jax.experimental.pallas import tpu as pltpu


def _round_up(v, m):
    return ((v + m - 1) // m) * m


@functools.lru_cache(maxsize=1)
def _device_kind():
    try:
        return jax.devices()[0].device_kind.lower()
    except Exception:
        return ""


def _has_bf16_eup():
    # v6e / v7x have a bf16 EUP (2x tanh rate); v5e and older do not.
    kind = _device_kind()
    return ("v6" in kind) or ("v7" in kind)


def _num_tensorcores():
    # v7x exposes 2 TensorCores per chip; v5e/v6e have 1.
    return 2 if "v7" in _device_kind() else 1


def _mlp_kernel(x_ref, w1_ref, b1_ref, w2_ref, b2_ref, w3_ref, b3_ref,
                w4_ref, b4_ref, o_ref, *, bf16_tanh):
    """Whole 4-layer MLP for one batch tile. fp32 MXU accumulation throughout."""

    def act(z):
        if bf16_tanh:
            # bf16 EUP path on v6e/v7x (~2x tanh throughput); fp32 dots kept.
            return jnp.tanh(z.astype(jnp.bfloat16)).astype(jnp.float32)
        return jnp.tanh(z)

    h = act(jnp.dot(x_ref[...], w1_ref[...],
                    preferred_element_type=jnp.float32) + b1_ref[...])
    h = act(jnp.dot(h, w2_ref[...],
                    preferred_element_type=jnp.float32) + b2_ref[...])
    h = act(jnp.dot(h, w3_ref[...],
                    preferred_element_type=jnp.float32) + b3_ref[...])
    out = (jnp.dot(h, w4_ref[...], preferred_element_type=jnp.float32)
           + b4_ref[...])
    o_ref[...] = out.astype(o_ref.dtype)


def prepare_params(params):
    """One-time host-side repack of PyTorch-convention parameters.

    (out, in) weights -> (in, out); biases -> (1, out). No output padding.
    """
    w1 = jnp.asarray(params["w1"]).T
    b1 = jnp.asarray(params["b1"])[None, :]
    w2 = jnp.asarray(params["w2"]).T
    b2 = jnp.asarray(params["b2"])[None, :]
    w3 = jnp.asarray(params["w3"]).T
    b3 = jnp.asarray(params["b3"])[None, :]
    w4 = jnp.asarray(params["w4"]).T
    b4 = jnp.asarray(params["b4"])[None, :]
    return (w1, b1, w2, b2, w3, b3, w4, b4)


@functools.partial(jax.jit, static_argnames=("batch_tile", "bf16_tanh"))
def mlp_regression_forward(x, prepared, *, batch_tile=8192, bf16_tanh=None):
    """x: (B, input_dim) float32. prepared: output of prepare_params().

    bf16_tanh=None  -> auto (enabled only on chips with a bf16 EUP: v6e/v7x).
    bf16_tanh=False -> exact fp32 semantics of the PyTorch module everywhere.
    """
    w1, b1, w2, b2, w3, b3, w4, b4 = prepared
    B, input_dim = x.shape
    out_dim = w4.shape[1]

    if bf16_tanh is None:
        bf16_tanh = _has_bf16_eup()

    # ---- batch tiling: large tiles (amortize ~0.35 us/step), cdiv grid,
    #      ragged last block handled by Pallas (no host-side pad / slice).
    tile = _round_up(min(batch_tile, max(B, 8)), 8)
    if _num_tensorcores() >= 2 and tile >= B and B >= 256:
        # v7x only: split a single big tile into 2 balanced tiles so the
        # "parallel" batch axis shards across both TensorCores.
        tile = _round_up(pl.cdiv(B, 2), 8)
    grid = pl.cdiv(B, tile)

    # Weights/biases are tiny: full blocks with a constant index map,
    # fetched once and reused for every batch tile.
    full = lambda a: pl.BlockSpec(a.shape, lambda i: (0, 0))

    out = pl.pallas_call(
        functools.partial(_mlp_kernel, bf16_tanh=bool(bf16_tanh)),
        out_shape=jax.ShapeDtypeStruct((B, out_dim), x.dtype),
        grid_spec=pltpu.PrefetchScalarGridSpec(
            num_scalar_prefetch=0,
            grid=(grid,),
            in_specs=[
                pl.BlockSpec((tile, input_dim), lambda i: (i, 0)),
                full(w1), full(b1),
                full(w2), full(b2),
                full(w3), full(b3),
                full(w4), full(b4),
            ],
            out_specs=pl.BlockSpec((tile, out_dim), lambda i: (i, 0)),
        ),
        compiler_params=pltpu.CompilerParams(
            dimension_semantics=("parallel",)),
    )(x, w1, b1, w2, b2, w3, b3, w4, b4)

    return out


def init_params(key, input_dim, output_dim, h1, h2, h3):
    """Deterministic synthetic init matching nn.Linear parameter shapes."""
    ks = jax.random.split(key, 8)

    def lin(kw, kb, fan_in, fan_out):
        bound = 1.0 / jnp.sqrt(fan_in)
        w = jax.random.uniform(kw, (fan_out, fan_in), jnp.float32, -bound, bound)
        b = jax.random.uniform(kb, (fan_out,), jnp.float32, -bound, bound)
        return w, b

    w1, b1 = lin(ks[0], ks[1], input_dim, h1)
    w2, b2 = lin(ks[2], ks[3], h1, h2)
    w3, b3 = lin(ks[4], ks[5], h2, h3)
    w4, b4 = lin(ks[6], ks[7], h3, output_dim)
    return dict(w1=w1, b1=b1, w2=w2, b2=b2, w3=w3, b3=b3, w4=w4, b4=b4)


def _reference(x, p):
    h = jnp.tanh(x @ p["w1"].T + p["b1"])
    h = jnp.tanh(h @ p["w2"].T + p["b2"])
    h = jnp.tanh(h @ p["w3"].T + p["b3"])
    return h @ p["w4"].T + p["b4"]


if __name__ == "__main__":
    key = jax.random.PRNGKey(0)
    k_x, k_x2, k_p = jax.random.split(key, 3)

    # Small shapes consistent with MLPRegression(input_dim, output_dim, h1, h2, h3)
    batch, input_dim, output_dim = 8, 16, 4
    h1, h2, h3 = 32, 32, 32

    params = init_params(k_p, input_dim, output_dim, h1, h2, h3)
    prepared = prepare_params(params)   # one-time host-side repack

    x = jax.random.normal(k_x, (batch, input_dim), jnp.float32)
    ref = _reference(x, params)

    # Exact fp32 path (matches the PyTorch module's fp32 semantics).
    out_fp32 = mlp_regression_forward(x, prepared, bf16_tanh=False)
    out_fp32 = jax.block_until_ready(out_fp32)
    assert out_fp32.shape == (batch, output_dim)
    assert jnp.allclose(out_fp32, ref, atol=1e-5, rtol=1e-5)

    # Auto path: bf16 tanh only on chips with a bf16 EUP (v6e/v7x); looser tol.
    out_auto = mlp_regression_forward(x, prepared)
    out_auto = jax.block_until_ready(out_auto)
    assert jnp.allclose(out_auto, ref, atol=2e-2, rtol=2e-2)

    # Non-divisible batch: exercises the cdiv grid + ragged last block path
    # (no host-side padding / slicing).
    x2 = jax.random.normal(k_x2, (300, input_dim), jnp.float32)
    out2 = mlp_regression_forward(x2, prepared, batch_tile=128, bf16_tanh=False)
    out2 = jax.block_until_ready(out2)
    assert out2.shape == (300, output_dim)
    assert jnp.allclose(out2, _reference(x2, params), atol=1e-5, rtol=1e-5)

    print("KERNEL_OK")
</pallas_src>

<mosaic_0001>
module attributes {stable_mosaic.version = 11 : i64} {
  func.func @_mlp_kernel(%arg0: i32, %arg1: memref<8x16xf32, #tpu.memory_space<vmem>>, %arg2: memref<16x32xf32, #tpu.memory_space<vmem>>, %arg3: memref<1x32xf32, #tpu.memory_space<vmem>>, %arg4: memref<32x32xf32, #tpu.memory_space<vmem>>, %arg5: memref<1x32xf32, #tpu.memory_space<vmem>>, %arg6: memref<32x32xf32, #tpu.memory_space<vmem>>, %arg7: memref<1x32xf32, #tpu.memory_space<vmem>>, %arg8: memref<32x4xf32, #tpu.memory_space<vmem>>, %arg9: memref<1x4xf32, #tpu.memory_space<vmem>>, %arg10: memref<8x4xf32, #tpu.memory_space<vmem>>) attributes {dimension_semantics = [#tpu.dimension_semantics<parallel>], iteration_bounds = array<i64: 1>, scalar_prefetch = 0 : i64, scratch_operands = 0 : i64, tpu.core_type = #tpu.core_type<tc>, window_params = [{transform_indices = @transform_0, window_bounds = array<i64: 8, 16>}, {pipeline_mode = #tpu.pipeline_mode<synchronous>, transform_indices = @transform_1, window_bounds = array<i64: 16, 32>}, {pipeline_mode = #tpu.pipeline_mode<synchronous>, transform_indices = @transform_2, window_bounds = array<i64: 1, 32>}, {pipeline_mode = #tpu.pipeline_mode<synchronous>, transform_indices = @transform_3, window_bounds = array<i64: 32, 32>}, {pipeline_mode = #tpu.pipeline_mode<synchronous>, transform_indices = @transform_4, window_bounds = array<i64: 1, 32>}, {pipeline_mode = #tpu.pipeline_mode<synchronous>, transform_indices = @transform_5, window_bounds = array<i64: 32, 32>}, {pipeline_mode = #tpu.pipeline_mode<synchronous>, transform_indices = @transform_6, window_bounds = array<i64: 1, 32>}, {pipeline_mode = #tpu.pipeline_mode<synchronous>, transform_indices = @transform_7, window_bounds = array<i64: 32, 4>}, {pipeline_mode = #tpu.pipeline_mode<synchronous>, transform_indices = @transform_8, window_bounds = array<i64: 1, 4>}, {transform_indices = @transform_9, window_bounds = array<i64: 8, 4>}]} {
    %c0 = arith.constant 0 : index
    %c0_0 = arith.constant 0 : index
    %0 = vector.load %arg1[%c0, %c0_0] : memref<8x16xf32, #tpu.memory_space<vmem>>, vector<8x16xf32>
    %c0_1 = arith.constant 0 : index
    %c0_2 = arith.constant 0 : index
    %1 = vector.load %arg2[%c0_1, %c0_2] : memref<16x32xf32, #tpu.memory_space<vmem>>, vector<16x32xf32>
    %cst = arith.constant dense<0.000000e+00> : vector<8x32xf32>
    %2 = tpu.matmul %0, %1, %cst {dimension_numbers = #tpu.dot_dimension_numbers<[1], [0], [0], [1], [0, 0, 1, 1], [], []>} : vector<8x16xf32>, vector<16x32xf32>, vector<8x32xf32> -> vector<8x32xf32>
    %c0_3 = arith.constant 0 : index
    %c0_4 = arith.constant 0 : index
    %3 = vector.load %arg3[%c0_3, %c0_4] : memref<1x32xf32, #tpu.memory_space<vmem>>, vector<1x32xf32>
    %4 = vector.broadcast %3 : vector<1x32xf32> to vector<8x32xf32>
    %5 = arith.addf %2, %4 : vector<8x32xf32>
    %6 = math.tanh %5 : vector<8x32xf32>
    %c0_5 = arith.constant 0 : index
    %c0_6 = arith.constant 0 : index
    %7 = vector.load %arg4[%c0_5, %c0_6] : memref<32x32xf32, #tpu.memory_space<vmem>>, vector<32x32xf32>
    %cst_7 = arith.constant dense<0.000000e+00> : vector<8x32xf32>
    %8 = tpu.matmul %6, %7, %cst_7 {dimension_numbers = #tpu.dot_dimension_numbers<[1], [0], [0], [1], [0, 0, 1, 1], [], []>} : vector<8x32xf32>, vector<32x32xf32>, vector<8x32xf32> -> vector<8x32xf32>
    %c0_8 = arith.constant 0 : index
    %c0_9 = arith.constant 0 : index
    %9 = vector.load %arg5[%c0_8, %c0_9] : memref<1x32xf32, #tpu.memory_space<vmem>>, vector<1x32xf32>
    %10 = vector.broadcast %9 : vector<1x32xf32> to vector<8x32xf32>
    %11 = arith.addf %8, %10 : vector<8x32xf32>
    %12 = math.tanh %11 : vector<8x32xf32>
    %c0_10 = arith.constant 0 : index
    %c0_11 = arith.constant 0 : index
    %13 = vector.load %arg6[%c0_10, %c0_11] : memref<32x32xf32, #tpu.memory_space<vmem>>, vector<32x32xf32>
    %cst_12 = arith.constant dense<0.000000e+00> : vector<8x32xf32>
    %14 = tpu.matmul %12, %13, %cst_12 {dimension_numbers = #tpu.dot_dimension_numbers<[1], [0], [0], [1], [0, 0, 1, 1], [], []>} : vector<8x32xf32>, vector<32x32xf32>, vector<8x32xf32> -> vector<8x32xf32>
    %c0_13 = arith.constant 0 : index
    %c0_14 = arith.constant 0 : index
    %15 = vector.load %arg7[%c0_13, %c0_14] : memref<1x32xf32, #tpu.memory_space<vmem>>, vector<1x32xf32>
    %16 = vector.broadcast %15 : vector<1x32xf32> to vector<8x32xf32>
    %17 = arith.addf %14, %16 : vector<8x32xf32>
    %18 = math.tanh %17 : vector<8x32xf32>
    %c0_15 = arith.constant 0 : index
    %c0_16 = arith.constant 0 : index
    %19 = vector.load %arg8[%c0_15, %c0_16] : memref<32x4xf32, #tpu.memory_space<vmem>>, vector<32x4xf32>
    %cst_17 = arith.constant dense<0.000000e+00> : vector<8x4xf32>
    %20 = tpu.matmul %18, %19, %cst_17 {dimension_numbers = #tpu.dot_dimension_numbers<[1], [0], [0], [1], [0, 0, 1, 1], [], []>} : vector<8x32xf32>, vector<32x4xf32>, vector<8x4xf32> -> vector<8x4xf32>
    %c0_18 = arith.constant 0 : index
    %c0_19 = arith.constant 0 : index
    %21 = vector.load %arg9[%c0_18, %c0_19] : memref<1x4xf32, #tpu.memory_space<vmem>>, vector<1x4xf32>
    %22 = vector.broadcast %21 : vector<1x4xf32> to vector<8x4xf32>
    %23 = arith.addf %20, %22 : vector<8x4xf32>
    %c0_20 = arith.constant 0 : index
    %c0_21 = arith.constant 0 : index
    %24 = vector.load %arg10[%c0_20, %c0_21] : memref<8x4xf32, #tpu.memory_space<vmem>>, vector<8x4xf32>
    tpu.vector_store %arg10[%c0_20, %c0_21], %23 {strides = array<i32>} : memref<8x4xf32, #tpu.memory_space<vmem>>, vector<8x4xf32>,
    return
  }
  func.func @transform_0(%arg0: i32) -> (i32, i32) {
    %c0_i32 = arith.constant 0 : i32
    %c0_i32_0 = arith.constant 0 : i32
    return %arg0, %c0_i32 : i32, i32
  }
  func.func @transform_1(%arg0: i32) -> (i32, i32) {
    %c0_i32 = arith.constant 0 : i32
    %c0_i32_0 = arith.constant 0 : i32
    %c0_i32_1 = arith.constant 0 : i32
    return %c0_i32, %c0_i32_0 : i32, i32
  }
  func.func @transform_2(%arg0: i32) -> (i32, i32) {
    %c0_i32 = arith.constant 0 : i32
    %c0_i32_0 = arith.constant 0 : i32
    %c0_i32_1 = arith.constant 0 : i32
    return %c0_i32, %c0_i32_0 : i32, i32
  }
  func.func @transform_3(%arg0: i32) -> (i32, i32) {
    %c0_i32 = arith.constant 0 : i32
    %c0_i32_0 = arith.constant 0 : i32
    %c0_i32_1 = arith.constant 0 : i32
    return %c0_i32, %c0_i32_0 : i32, i32
  }
  func.func @transform_4(%arg0: i32) -> (i32, i32) {
    %c0_i32 = arith.constant 0 : i32
    %c0_i32_0 = arith.constant 0 : i32
    %c0_i32_1 = arith.constant 0 : i32
    return %c0_i32, %c0_i32_0 : i32, i32
  }
  func.func @transform_5(%arg0: i32) -> (i32, i32) {
    %c0_i32 = arith.constant 0 : i32
    %c0_i32_0 = arith.constant 0 : i32
    %c0_i32_1 = arith.constant 0 : i32
    return %c0_i32, %c0_i32_0 : i32, i32
  }
  func.func @transform_6(%arg0: i32) -> (i32, i32) {
    %c0_i32 = arith.constant 0 : i32
    %c0_i32_0 = arith.constant 0 : i32
    %c0_i32_1 = arith.constant 0 : i32
    return %c0_i32, %c0_i32_0 : i32, i32
  }
  func.func @transform_7(%arg0: i32) -> (i32, i32) {
    %c0_i32 = arith.constant 0 : i32
    %c0_i32_0 = arith.constant 0 : i32
    %c0_i32_1 = arith.constant 0 : i32
    return %c0_i32, %c0_i32_0 : i32, i32
  }
  func.func @transform_8(%arg0: i32) -> (i32, i32) {
    %c0_i32 = arith.constant 0 : i32
    %c0_i32_0 = arith.constant 0 : i32
    %c0_i32_1 = arith.constant 0 : i32
    return %c0_i32, %c0_i32_0 : i32, i32
  }
  func.func @transform_9(%arg0: i32) -> (i32, i32) {
    %c0_i32 = arith.constant 0 : i32
    %c0_i32_0 = arith.constant 0 : i32
    return %arg0, %c0_i32 : i32, i32
  }
}

</mosaic_0001>

<llo_original>
// kernel: mlp_regression_forward.1
$region0: #{mlp_regression_forward.1}
  #allocation0 [shape = 'u32[]', space=smem, size = 0x4, offset = 0x4, fixed_abs, tag = 'smem constant byte address 0x4 - core index']
  #allocation1 [shape = 'u32[72,128]{1,0:T(1,128)}', space=vmem, size = 0x9000, scoped, tag = 'internal scratch']
  %s0 = inlined_call_operand.hbm [shape: f32[8,16], index: 0, kind: input, shape index: {}]
  %s1 = inlined_call_operand.hbm [shape: f32[16,32], index: 1, kind: input, shape index: {}]
  %s2 = inlined_call_operand.vmem [shape: f32[1,32], index: 2, kind: input, shape index: {}]
  %s3 = inlined_call_operand.vmem [shape: f32[32,32], index: 3, kind: input, shape index: {}]
  %s4 = inlined_call_operand.vmem [shape: f32[1,32], index: 4, kind: input, shape index: {}]
  %s5 = inlined_call_operand.hbm [shape: f32[32,32], index: 5, kind: input, shape index: {}]
  %s6 = inlined_call_operand.vmem [shape: f32[1,32], index: 6, kind: input, shape index: {}]
  %s7 = inlined_call_operand.vmem [shape: f32[32,4], index: 7, kind: input, shape index: {}]
  %s8 = inlined_call_operand.vmem [shape: f32[1,4], index: 8, kind: input, shape index: {}]
  %s9 = inlined_call_operand.vmem [shape: f32[8,4], index: 9, kind: output, shape index: {}]
  %s10 = sld [smem:[#allocation0]]
  $region58: #{mlp_regression_forward.1} parent=0
    _
  %s12 = ssub.s32 1, %s10
  %s13 = scalar_select 0, %s12, %s10
  $region1: #{mlp_regression_forward.1} parent=0
    #allocation2 [shape = 'u8[4096]{0}', space=vmem, size = 0x1000, scoped, tag = 'input window, operand 0, single buffered']
    #allocation3 [shape = 's32[1]{0}', space=sflag, size = 0x4, scoped, tag = 'scoped memory for mlp_regression_forward.1']
    #allocation4 [shape = 'u8[8192]{0}', space=vmem, size = 0x2000, scoped, tag = 'input window, operand 1, single buffered']
    #allocation5 [shape = 's32[1]{0}', space=sflag, size = 0x4, scoped, tag = 'scoped memory for mlp_regression_forward.1']
    #allocation6 [shape = 'u8[16384]{0}', space=vmem, size = 0x4000, scoped, tag = 'input window, operand 5, single buffered']
    %14 = vsyncpa [#allocation3], 0
    %15 = vsyncpa [#allocation5], 0
    // Predicated region
    $region2: #{mlp_regression_forward.1} parent=1 // pred_check
      _
    $region3: #{mlp_regression_forward.1} parent=1 // pred_check_branch
      %17 = sbr.rel (0) target = $region5
    $region4: #{mlp_regression_forward.1} parent=1 // pred_region
      %19 = vsyncadd [#allocation3], 0
      %s21 = sshll.u32 %s0, 4
      %s22 = int_to_ptr.hbm [resolvable:$true] %s21
      %s23 = sshll.u32 [#allocation2], 4
      %s24 = int_to_ptr.vmem [resolvable:$true] %s23
      %26 = dma.hbm_to_vmem [thread:$0]  %s22, 128, %s24, [#allocation3]
    $region5: #{mlp_regression_forward.1} parent=1 // pred_fallthru
      _
    // Predicated region
    $region6: #{mlp_regression_forward.1} parent=1 // pred_check
      _
    $region7: #{mlp_regression_forward.1} parent=1 // pred_check_branch
      %28 = sbr.rel (0) target = $region9
    $region8: #{mlp_regression_forward.1} parent=1 // pred_region
      %30 = vsyncadd [#allocation5], 0
      %s31 = sshll.u32 %s1, 4
      %s32 = int_to_ptr.hbm [resolvable:$true] %s31
      %s33 = sshll.u32 [#allocation4], 4
      %s34 = int_to_ptr.vmem [resolvable:$true] %s33
      %39 = dma.hbm_to_vmem [thread:$0]  %s32, 256, %s34, [#allocation5], 128, 128, 8
    $region9: #{mlp_regression_forward.1} parent=1 // pred_fallthru
      _
    // Predicated region
    $region10: #{mlp_regression_forward.1} parent=1 // pred_check
      _
    $region11: #{mlp_regression_forward.1} parent=1 // pred_check_branch
      %41 = sbr.rel (0) target = $region13
    $region12: #{mlp_regression_forward.1} parent=1 // pred_region
      _
    $region13: #{mlp_regression_forward.1} parent=1 // pred_fallthru
      _
    // Predicated region
    $region14: #{mlp_regression_forward.1} parent=1 // pred_check
      _
    $region15: #{mlp_regression_forward.1} parent=1 // pred_check_branch
      %43 = sbr.rel (0) target = $region17
    $region16: #{mlp_regression_forward.1} parent=1 // pred_region
      _
    $region17: #{mlp_regression_forward.1} parent=1 // pred_fallthru
      _
    // Predicated region
    $region18: #{mlp_regression_forward.1} parent=1 // pred_check
      _
    $region19: #{mlp_regression_forward.1} parent=1 // pred_check_branch
      %45 = sbr.rel (0) target = $region21
    $region20: #{mlp_regression_forward.1} parent=1 // pred_region
      _
    $region21: #{mlp_regression_forward.1} parent=1 // pred_fallthru
      _
    // Predicated region
    $region22: #{mlp_regression_forward.1} parent=1 // pred_check
      _
    $region23: #{mlp_regression_forward.1} parent=1 // pred_check_branch
      %47 = sbr.rel (0) target = $region25
    $region24: #{mlp_regression_forward.1} parent=1 // pred_region
      %49 = vsyncadd [#allocation5], 0
      %s50 = sshll.u32 %s5, 4
      %s51 = int_to_ptr.hbm [resolvable:$true] %s50
      %s52 = sshll.u32 [#allocation6], 4
      %s53 = int_to_ptr.vmem [resolvable:$true] %s52
      %58 = dma.hbm_to_vmem [thread:$0]  %s51, 512, %s53, [#allocation5], 128, 128, 8
    $region25: #{mlp_regression_forward.1} parent=1 // pred_fallthru
      _
    // Predicated region
    $region26: #{mlp_regression_forward.1} parent=1 // pred_check
      _
    $region27: #{mlp_regression_forward.1} parent=1 // pred_check_branch
      %60 = sbr.rel (0) target = $region29
    $region28: #{mlp_regression_forward.1} parent=1 // pred_region
      _
    $region29: #{mlp_regression_forward.1} parent=1 // pred_fallthru
      _
    // Predicated region
    $region30: #{mlp_regression_forward.1} parent=1 // pred_check
      _
    $region31: #{mlp_regression_forward.1} parent=1 // pred_check_branch
      %62 = sbr.rel (0) target = $region33
    $region32: #{mlp_regression_forward.1} parent=1 // pred_region
      _
    $region33: #{mlp_regression_forward.1} parent=1 // pred_fallthru
      _
    // Predicated region
    $region34: #{mlp_regression_forward.1} parent=1 // pred_check
      _
    $region35: #{mlp_regression_forward.1} parent=1 // pred_check_branch
      %64 = sbr.rel (0) target = $region37
    $region36: #{mlp_regression_forward.1} parent=1 // pred_region
      _
    $region37: #{mlp_regression_forward.1} parent=1 // pred_fallthru
      _
    // Predicated region
    $region38: #{mlp_regression_forward.1} parent=1 // pred_check
      _
    $region39: #{mlp_regression_forward.1} parent=1 // pred_check_branch
      %66 = sbr.rel (0) target = $region41
    $region40: #{mlp_regression_forward.1} parent=1 // pred_region
      %68 = dma.done [#allocation3], 128
    $region41: #{mlp_regression_forward.1} parent=1 // pred_fallthru
      _
    // Predicated region
    $region42: #{mlp_regression_forward.1} parent=1 // pred_check
      _
    $region43: #{mlp_regression_forward.1} parent=1 // pred_check_branch
      %70 = sbr.rel (0) target = $region45
    $region44: #{mlp_regression_forward.1} parent=1 // pred_region
      %72 = dma.done [#allocation5], 256
    $region45: #{mlp_regression_forward.1} parent=1 // pred_fallthru
      _
    // Predicated region
    $region46: #{mlp_regression_forward.1} parent=1 // pred_check
      _
    $region47: #{mlp_regression_forward.1} parent=1 // pred_check_branch
      %74 = sbr.rel (0) target = $region49
    $region48: #{mlp_regression_forward.1} parent=1 // pred_region
      %76 = dma.done [#allocation5], 512
    $region49: #{mlp_regression_forward.1} parent=1 // pred_fallthru
      _
    %v77 = vld [vmem:[#allocation2] sm:$0xff]
    %v78 = vld [vmem:[#allocation4] sm:$0xff]
    %v79 = vld [vmem:[#allocation4 + $0x8] sm:$0xff]
    %v80 = vld [vmem:[%s2] sm:$0x1]
    %v82 = vperm.slane %v80, 0
    %vm84 = vcmask 130048
    %v86 = vsel %vm84, %v77, 0
    %88 = vmatpush.msra.mxu0 0.0
    %89 = vmatpush.msra.mxu0 0.0
    %90 = vmatpush.msra.mxu0 0.0
    %91 = vmatpush.msra.mxu0 0.0
    %92 = vmatpush.msra.mxu0 0.0
    %93 = vmatpush.msra.mxu0 0.0
    %94 = vmatpush.msra.mxu0 0.0
    %95 = vmatpush.msra.mxu0 0.0
    %96 = vmatpush.msra.mxu0 0.0
    %97 = vmatpush.msra.mxu0 0.0
    %98 = vmatpush.msra.mxu0 0.0
    %99 = vmatpush.msra.mxu0 0.0
    %100 = vmatpush.msra.mxu0 0.0
    %101 = vmatpush.msra.mxu0 0.0
    %102 = vmatpush.msra.mxu0 %v79
    %103 = vmatpush.msra.mxu0 %v78
    %104 = vmatmul.f32.gmra.mxu0 %v86
    %v105 = vpop.f32.mrf.mxu0
    %v106 = vadd.f32 %v82, %v105
    %107 = vdwg.mxu0
    %v108 = vtanh.pop %v106
    %v109 = vld [vmem:[%s3] sm:$0xff]
    %v110 = vld [vmem:[%s3 + $0x8] sm:$0xff]
    %v111 = vld [vmem:[%s3 + $0x10] sm:$0xff]
    %v112 = vld [vmem:[%s3 + $0x18] sm:$0xff]
    %v113 = vld [vmem:[%s4] sm:$0x1]
    %v115 = vperm.slane %v113, 0
    %vm117 = vcmask 261120
    %v119 = vsel %vm117, %v108, 0
    %121 = vmatpush.msra.mxu0 0.0
    %122 = vmatpush.msra.mxu0 0.0
    %123 = vmatpush.msra.mxu0 0.0
    %124 = vmatpush.msra.mxu0 0.0
    %125 = vmatpush.msra.mxu0 0.0
    %126 = vmatpush.msra.mxu0 0.0
    %127 = vmatpush.msra.mxu0 0.0
    %128 = vmatpush.msra.mxu0 0.0
    %129 = vmatpush.msra.mxu0 0.0
    %130 = vmatpush.msra.mxu0 0.0
    %131 = vmatpush.msra.mxu0 0.0
    %132 = vmatpush.msra.mxu0 0.0
    %133 = vmatpush.msra.mxu0 %v112
    %134 = vmatpush.msra.mxu0 %v111
    %135 = vmatpush.msra.mxu0 %v110
    %136 = vmatpush.msra.mxu0 %v109
    %137 = vmatmul.f32.gmra.mxu0 %v119
    %v138 = vpop.f32.mrf.mxu0
    %v139 = vadd.f32 %v115, %v138
    %140 = vdwg.mxu0
    %v141 = vtanh.pop %v139
    %v142 = vld [vmem:[#allocation6] sm:$0xff]
    %v143 = vld [vmem:[#allocation6 + $0x8] sm:$0xff]
    %v144 = vld [vmem:[#allocation6 + $0x10] sm:$0xff]
    %v145 = vld [vmem:[#allocation6 + $0x18] sm:$0xff]
    %v146 = vld [vmem:[%s6] sm:$0x1]
    %v148 = vperm.slane %v146, 0
    %v151 = vsel %vm117, %v141, 0
    %153 = vmatpush.msra.mxu0 0.0
    %154 = vmatpush.msra.mxu0 0.0
    %155 = vmatpush.msra.mxu0 0.0
    %156 = vmatpush.msra.mxu0 0.0
    %157 = vmatpush.msra.mxu0 0.0
    %158 = vmatpush.msra.mxu0 0.0
    %159 = vmatpush.msra.mxu0 0.0
    %160 = vmatpush.msra.mxu0 0.0
    %161 = vmatpush.msra.mxu0 0.0
    %162 = vmatpush.msra.mxu0 0.0
    %163 = vmatpush.msra.mxu0 0.0
    %164 = vmatpush.msra.mxu0 0.0
    %165 = vmatpush.msra.mxu0 %v145
    %166 = vmatpush.msra.mxu0 %v144
    %167 = vmatpush.msra.mxu0 %v143
    %168 = vmatpush.msra.mxu0 %v142
    %169 = vmatmul.f32.gmra.mxu0 %v151
    %v170 = vpop.f32.mrf.mxu0
    %v171 = vadd.f32 %v148, %v170
    %172 = vdwg.mxu0
    %v173 = vtanh.pop %v171
    %v174 = vld [vmem:[%s7] sm:$0xff]
    %v175 = vld [vmem:[%s7 + $0x8] sm:$0xff]
    %v176 = vld [vmem:[%s7 + $0x10] sm:$0xff]
    %v177 = vld [vmem:[%s7 + $0x18] sm:$0xff]
    %v178 = vld [vmem:[%s8] sm:$0x1]
    %v180 = vperm.slane %v178, 0
    %v183 = vsel %vm117, %v173, 0
    %185 = vmatpush.msra.mxu0 0.0
    %186 = vmatpush.msra.mxu0 0.0
    %187 = vmatpush.msra.mxu0 0.0
    %188 = vmatpush.msra.mxu0 0.0
    %189 = vmatpush.msra.mxu0 0.0
    %190 = vmatpush.msra.mxu0 0.0
    %191 = vmatpush.msra.mxu0 0.0
    %192 = vmatpush.msra.mxu0 0.0
    %193 = vmatpush.msra.mxu0 0.0
    %194 = vmatpush.msra.mxu0 0.0
    %195 = vmatpush.msra.mxu0 0.0
    %196 = vmatpush.msra.mxu0 0.0
    %197 = vmatpush.msra.mxu0 %v177
    %198 = vmatpush.msra.mxu0 %v176
    %199 = vmatpush.msra.mxu0 %v175
    %200 = vmatpush.msra.mxu0 %v174
    %201 = vmatmul.f32.gmra.mxu0 %v183
    %v202 = vpop.f32.mrf.mxu0
    %v203 = vadd.f32 %v180, %v202
    %204 = vdwg.mxu0
    %vm205 = vcmask 31744
    %206 = vst.msk [vmem:[%s9] sm:$0xff] %vm205, %v203
    // Predicated region
    $region50: #{mlp_regression_forward.1} parent=1 // pred_check
      _
    $region51: #{mlp_regression_forward.1} parent=1 // pred_check_branch
      %208 = sbr.rel (0) target = $region53
    $region52: #{mlp_regression_forward.1} parent=1 // pred_region
      _
    $region53: #{mlp_regression_forward.1} parent=1 // pred_fallthru
      _
    // Predicated region
    $region54: #{mlp_regression_forward.1} parent=1 // pred_check
      _
    $region55: #{mlp_regression_forward.1} parent=1 // pred_check_branch
      %210 = sbr.rel (0) target = $region57
    $region56: #{mlp_regression_forward.1} parent=1 // pred_region
      _
    $region57: #{mlp_regression_forward.1} parent=1 // pred_fallthru
      _
    %211 = vsyncpa [#allocation3], 1
    %212 = vsyncpa [#allocation5], 1

</llo_original>
